<compile_context>
chip_gen: v7x
topology: tpu7x:2x2x1
jax: 0.10.0
libtpu: 0.0.40
codegen_flags: <defaults>
</compile_context>

<pallas_src>
import functools
import math

import jax
import jax.numpy as jnp
import numpy as np
from jax import lax
from jax.experimental import pallas as pl
from jax.experimental.pallas import tpu as pltpu

# L0-regularization constants (module-level globals in l0_module.py)
LIMIT_A = -0.1
LIMIT_B = 1.1
EPSILON = 1e-6
TEMPERATURE = 2.0 / 3.0
MAGICAL_NUMBER = 0.8

_XN = (0.0 - LIMIT_A) / (LIMIT_B - LIMIT_A)
_LOGITS = math.log(_XN) - math.log(1.0 - _XN)


# ----------------------------------------------------------------------------
# eval path: deterministic_z
# ----------------------------------------------------------------------------
def _det_kernel(z_ref, out_ref, *, n, num_zeros, col_tile):
    """One grid step == one mask row.  z_ref/out_ref: (1, 1, n) f32 blocks.

    num_zeros: static int (eval_target_model path) or None (CDF path).
    col_tile:  static column-tile width for the O(n^2) rank; sized so the live
               (n, col_tile) temporaries stay well inside v7x's 32 MiB scoped
               VMEM even for the largest realistic masks.
    """
    z_row = z_ref[0]                                             # (1, n)
    soft = jax.nn.sigmoid(z_row / TEMPERATURE * MAGICAL_NUMBER)  # (1, n)

    # Static degenerate shortcuts: skip the O(n^2) rank block entirely.
    if num_zeros == 0:
        out_ref[0] = soft
        return
    if num_zeros is not None and num_zeros >= n:
        out_ref[0] = jnp.zeros_like(soft)
        return

    if num_zeros is not None:
        # eval_target_model path: num_zeros = mask_size - target_mask_size
        k = float(num_zeros)                                     # static scalar
    else:
        # Expected number of zeros per row from the stretched-concrete CDF:
        #   nelement - sum(1 - cdf)  ==  sum(cdf)   (fused to one reduce)
        cdf = jnp.clip(jax.nn.sigmoid(_LOGITS * TEMPERATURE - z_row),
                       EPSILON, 1.0 - EPSILON)
        k = jnp.round(jnp.sum(cdf, axis=1, keepdims=True))       # (1, 1)

    # ---- loop invariants, hoisted out of the column-tile loop ----
    z_col = jnp.transpose(z_row)                        # (n, 1) lane->sublane move
    ii = lax.broadcasted_iota(jnp.int32, (n, 1), 0)     # (n, 1) row index
    ones_lhs = jnp.ones((8, n), jnp.float32)            # MXU lhs (sublane-padded)

    parts = []
    for start in range(0, n, col_tile):
        size = min(col_tile, n - start)
        zj = z_row[:, start:start + size]                           # (1, size)
        jj = lax.broadcasted_iota(jnp.int32, (1, size), 1) + start  # (1, size)
        # smaller[i, j] = 1 iff element i precedes element j in ascending order
        # (strictly smaller, or equal with lower index)            -> (n, size)
        smaller = (z_col < zj) | ((z_col == zj) & (ii < jj))
        # rank[j] = #smaller — cross-sublane count done on the MXU so the
        # XLU/VALU slots (the binding units here) stay free.
        rank = jnp.dot(ones_lhs, smaller.astype(jnp.float32),
                       preferred_element_type=jnp.float32)[0:1, :]  # (1, size)
        # zero out the `k` smallest entries (== torch.topk(..., largest=False))
        parts.append(jnp.where(rank < k, 0.0, soft[:, start:start + size]))

    # single full-block (unmasked, lane-dense) store
    out_ref[0] = parts[0] if len(parts) == 1 else jnp.concatenate(parts, axis=1)


def deterministic_z(z_loga, *, target_mask_size=None, eval_target_model=True,
                    col_tile=256):
    n = z_loga.shape[-1]
    z3d = z_loga.reshape(-1, 1, n).astype(jnp.float32)
    rows = z3d.shape[0]
    if target_mask_size is not None and eval_target_model:
        num_zeros = int(n - target_mask_size)
    else:
        num_zeros = None  # computed in-kernel from the concrete CDF (per row)
    kernel = functools.partial(_det_kernel, n=n, num_zeros=num_zeros,
                               col_tile=int(col_tile))
    out = pl.pallas_call(
        kernel,
        out_shape=jax.ShapeDtypeStruct((rows, 1, n), jnp.float32),
        grid=(rows,),
        in_specs=[pl.BlockSpec((1, 1, n), lambda r: (r, 0, 0))],
        out_specs=pl.BlockSpec((1, 1, n), lambda r: (r, 0, 0)),
        compiler_params=pltpu.CompilerParams(
            dimension_semantics=("parallel",)),
    )(z3d)
    return out.reshape(rows, n)


# ----------------------------------------------------------------------------
# training path: sample_z
# ----------------------------------------------------------------------------
def _sample_kernel(z_ref, u_ref, out_ref):
    """z_ref / u_ref / out_ref: (1, 1, tile) f32 blocks; purely elementwise."""
    z = z_ref[0]                                       # (1, tile)
    u = u_ref[0]                                       # (1, tile), uniform [0, 1)
    eps = EPSILON + u * (1.0 - 2.0 * EPSILON)          # U(epsilon, 1 - epsilon)
    # single-log logistic noise (one fewer EUP push than log(eps) - log(1-eps))
    y = jax.nn.sigmoid((jnp.log(eps / (1.0 - eps)) + z) / TEMPERATURE)
    z_stretched = y * (LIMIT_B - LIMIT_A) + LIMIT_A
    out_ref[0] = jnp.clip(z_stretched, 0.0, 1.0)       # hardtanh(0, 1)


def sample_z(z_loga, key, *, lane_tile=4096):
    n = z_loga.shape[-1]
    z3d = z_loga.reshape(-1, 1, n).astype(jnp.float32)
    rows = z3d.shape[0]
    # Uniform noise drawn host-side (deterministic given `key`), exactly like
    # torch's FloatTensor.uniform_ in get_eps().
    u = jax.random.uniform(key, (rows, 1, n), dtype=jnp.float32)
    # Real grid over (row, lane-tile) so the HBM->VMEM DMA pipelines instead of
    # being fully exposed on a single whole-slab block.
    tn = lane_tile if (n > lane_tile and n % lane_tile == 0) else n
    spec = pl.BlockSpec((1, 1, tn), lambda r, c: (r, 0, c))
    out = pl.pallas_call(
        _sample_kernel,
        out_shape=jax.ShapeDtypeStruct((rows, 1, n), jnp.float32),
        grid=(rows, n // tn),
        in_specs=[spec, spec],
        out_specs=spec,
        compiler_params=pltpu.CompilerParams(
            dimension_semantics=("parallel", "parallel")),
    )(z3d, u)
    return out.reshape(rows, n)


# ----------------------------------------------------------------------------
# Mask.forward
# ----------------------------------------------------------------------------
def mask_forward(z_loga, mask_output_shape, *, training, rng_key=None,
                 target_mask_size=None, eval_target_model=True):
    # NOTE: all Mask modules with the same per-mask size N can (and should) be
    # stacked into one z_loga slab and one pallas_call — the row grid axis
    # already handles arbitrary `rows`, amortizing launch overhead.
    if training:
        if rng_key is None:
            rng_key = jax.random.PRNGKey(0)
        z = sample_z(z_loga, rng_key)
    else:
        z = deterministic_z(z_loga, target_mask_size=target_mask_size,
                            eval_target_model=eval_target_model)
    return z.reshape(mask_output_shape)


if __name__ == "__main__":
    key = jax.random.PRNGKey(0)
    k_init, k_noise = jax.random.split(key)

    # Mask config (e.g. a per-layer head mask):
    #   mask_shape=[4, 128], mask_output_shape=[4, 1, 128, 1], target_mask_size=96
    R, N = 4, 128
    mask_output_shape = (R, 1, N, 1)
    target_mask_size = 96

    # param_init_fn: normal(mean=5, std=0.01), deterministic via PRNGKey
    z_loga = 5.0 + 0.01 * jax.random.normal(k_init, (R, N), dtype=jnp.float32)

    soft = jax.nn.sigmoid(z_loga / TEMPERATURE * MAGICAL_NUMBER)
    order = jnp.argsort(z_loga, axis=-1)

    # ---- eval path (deterministic_z, eval_target_model=True) ----------------
    z_eval = mask_forward(z_loga, mask_output_shape, training=False,
                          target_mask_size=target_mask_size,
                          eval_target_model=True)
    z_eval = jax.block_until_ready(z_eval)

    num_zeros = N - target_mask_size
    drop_idx = order[:, :num_zeros]
    ref = soft.at[jnp.arange(R)[:, None], drop_idx].set(0.0)
    ref = ref.reshape(mask_output_shape)
    np.testing.assert_allclose(np.asarray(z_eval), np.asarray(ref),
                               rtol=1e-5, atol=1e-6)
    assert int((np.asarray(z_eval) == 0.0).sum()) == R * num_zeros

    # ---- eval path without target (num_zeros from the CDF, in-kernel) -------
    z_eval2 = mask_forward(z_loga, mask_output_shape, training=False,
                           target_mask_size=None, eval_target_model=False)
    z_eval2 = jax.block_until_ready(z_eval2)
    cdf = jnp.clip(jax.nn.sigmoid(_LOGITS * TEMPERATURE - z_loga),
                   EPSILON, 1.0 - EPSILON)
    k_rows = np.asarray(jnp.round(jnp.sum(cdf, axis=-1))).astype(int)
    ref2 = np.asarray(soft).copy()
    order_np = np.asarray(order)
    for r in range(R):
        if k_rows[r] > 0:
            ref2[r, order_np[r, :k_rows[r]]] = 0.0
    np.testing.assert_allclose(np.asarray(z_eval2).reshape(R, N), ref2,
                               rtol=1e-5, atol=1e-6)

    # ---- training path (sample_z with host-drawn uniform noise) -------------
    z_train = mask_forward(z_loga, mask_output_shape, training=True,
                           rng_key=k_noise)
    z_train = jax.block_until_ready(z_train)
    u = jax.random.uniform(k_noise, (R, 1, N), dtype=jnp.float32).reshape(R, N)
    eps = EPSILON + u * (1.0 - 2.0 * EPSILON)
    y = jax.nn.sigmoid((jnp.log(eps) - jnp.log(1.0 - eps) + z_loga) / TEMPERATURE)
    ref3 = jnp.clip(y * (LIMIT_B - LIMIT_A) + LIMIT_A, 0.0, 1.0)
    ref3 = ref3.reshape(mask_output_shape)
    np.testing.assert_allclose(np.asarray(z_train), np.asarray(ref3),
                               rtol=1e-5, atol=2e-5)
    assert float(z_train.min()) >= 0.0 and float(z_train.max()) <= 1.0

    print("KERNEL_OK")
</pallas_src>

<mosaic_0001>
module attributes {stable_mosaic.version = 11 : i64} {
  func.func @_det_kernel(%arg0: i32, %arg1: memref<1x1x128xf32, #tpu.memory_space<vmem>>, %arg2: memref<1x1x128xf32, #tpu.memory_space<vmem>>) attributes {dimension_semantics = [#tpu.dimension_semantics<parallel>], iteration_bounds = array<i64: 4>, scalar_prefetch = 0 : i64, scratch_operands = 0 : i64, tpu.core_type = #tpu.core_type<tc>, window_params = [{transform_indices = @transform_0, window_bounds = array<i64: 1, 1, 128>}, {transform_indices = @transform_1, window_bounds = array<i64: 1, 1, 128>}]} {
    %c0 = arith.constant 0 : index
    %c0_0 = arith.constant 0 : index
    %c0_1 = arith.constant 0 : index
    %0 = vector.load %arg1[%c0, %c0_0, %c0_1] : memref<1x1x128xf32, #tpu.memory_space<vmem>>, vector<1x1x128xf32>
    %1 = vector.shape_cast %0 : vector<1x1x128xf32> to vector<1x128xf32>
    %cst = arith.constant 0.666666686 : f32
    %2 = vector.broadcast %cst : f32 to vector<1x128xf32>
    %3 = arith.divf %1, %2 : vector<1x128xf32>
    %cst_2 = arith.constant 8.000000e-01 : f32
    %4 = vector.broadcast %cst_2 : f32 to vector<1x128xf32>
    %5 = arith.mulf %3, %4 : vector<1x128xf32>
    %6 = arith.negf %5 : vector<1x128xf32>
    %7 = math.exp %6 : vector<1x128xf32>
    %cst_3 = arith.constant 1.000000e+00 : f32
    %8 = vector.broadcast %cst_3 : f32 to vector<1x128xf32>
    %9 = arith.addf %8, %7 : vector<1x128xf32>
    %10 = arith.divf %8, %9 : vector<1x128xf32>
    %11 = tpu.transpose %1, [1, 0] : vector<1x128xf32> -> vector<128x1xf32>
    %12 = tpu.iota {dimensions = array<i32: 0>} : vector<128x1xi32>
    %cst_4 = arith.constant 1.000000e+00 : f32
    %13 = vector.broadcast %cst_4 : f32 to vector<8x128xf32>
    %14 = tpu.iota {dimensions = array<i32: 1>} : vector<1x128xi32>
    %c0_i32 = arith.constant 0 : i32
    %15 = vector.broadcast %c0_i32 : i32 to vector<1x128xi32>
    %16 = arith.addi %14, %15 : vector<1x128xi32>
    %17 = vector.broadcast %11 : vector<128x1xf32> to vector<128x128xf32>
    %18 = vector.broadcast %1 : vector<1x128xf32> to vector<128x128xf32>
    %19 = arith.cmpf olt, %17, %18 : vector<128x128xf32>
    %20 = vector.broadcast %11 : vector<128x1xf32> to vector<128x128xf32>
    %21 = vector.broadcast %1 : vector<1x128xf32> to vector<128x128xf32>
    %22 = arith.cmpf oeq, %20, %21 : vector<128x128xf32>
    %23 = vector.broadcast %12 : vector<128x1xi32> to vector<128x128xi32>
    %24 = vector.broadcast %16 : vector<1x128xi32> to vector<128x128xi32>
    %25 = arith.cmpi slt, %23, %24 : vector<128x128xi32>
    %26 = arith.andi %22, %25 : vector<128x128xi1>
    %27 = arith.ori %19, %26 : vector<128x128xi1>
    %28 = arith.extui %27 : vector<128x128xi1> to vector<128x128xi32>
    %29 = arith.sitofp %28 : vector<128x128xi32> to vector<128x128xf32>
    %cst_5 = arith.constant dense<0.000000e+00> : vector<8x128xf32>
    %30 = tpu.matmul %13, %29, %cst_5 {dimension_numbers = #tpu.dot_dimension_numbers<[1], [0], [0], [1], [0, 0, 1, 1], [], []>} : vector<8x128xf32>, vector<128x128xf32>, vector<8x128xf32> -> vector<8x128xf32>
    %31 = vector.extract_strided_slice %30 {offsets = [0, 0], sizes = [1, 128], strides = [1, 1]} : vector<8x128xf32> to vector<1x128xf32>
    %cst_6 = arith.constant 3.200000e+01 : f32
    %32 = vector.broadcast %cst_6 : f32 to vector<1x128xf32>
    %33 = arith.cmpf olt, %31, %32 : vector<1x128xf32>
    %cst_7 = arith.constant 0.000000e+00 : f32
    %34 = vector.broadcast %cst_7 : f32 to vector<1x128xf32>
    %35 = arith.select %33, %34, %10 : vector<1x128xi1>, vector<1x128xf32>
    %c0_8 = arith.constant 0 : index
    %c0_9 = arith.constant 0 : index
    %c0_10 = arith.constant 0 : index
    %36 = vector.load %arg2[%c0_8, %c0_9, %c0_10] : memref<1x1x128xf32, #tpu.memory_space<vmem>>, vector<1x1x128xf32>
    %37 = vector.shape_cast %36 : vector<1x1x128xf32> to vector<1x128xf32>
    %38 = vector.shape_cast %35 : vector<1x128xf32> to vector<1x1x128xf32>
    tpu.vector_store %arg2[%c0_8, %c0_9, %c0_10], %38 {strides = array<i32>} : memref<1x1x128xf32, #tpu.memory_space<vmem>>, vector<1x1x128xf32>,
    return
  }
  func.func @transform_0(%arg0: i32) -> (i32, i32, i32) {
    %c0_i32 = arith.constant 0 : i32
    %c0_i32_0 = arith.constant 0 : i32
    %c0_i32_1 = arith.constant 0 : i32
    return %arg0, %c0_i32, %c0_i32_0 : i32, i32, i32
  }
  func.func @transform_1(%arg0: i32) -> (i32, i32, i32) {
    %c0_i32 = arith.constant 0 : i32
    %c0_i32_0 = arith.constant 0 : i32
    %c0_i32_1 = arith.constant 0 : i32
    return %arg0, %c0_i32, %c0_i32_0 : i32, i32, i32
  }
}

</mosaic_0001>

<llo_original>
// kernel: tpu_custom_call.1
$region0: #{tpu_custom_call.1}
  #allocation0 [shape = 'u32[]', space=smem, size = 0x4, offset = 0x4, fixed_abs, tag = 'smem constant byte address 0x4 - core index']
  #allocation1 [shape = 'u32[144,128]{1,0:T(1,128)}', space=vmem, size = 0x12000, scoped, tag = 'internal scratch']
  %s0 = inlined_call_operand.hbm [shape: f32[4,1,128], index: 0, kind: input, shape index: {}]
  %s1 = inlined_call_operand.hbm [shape: f32[4,1,128], index: 1, kind: output, shape index: {}]
  %s2 = sld [smem:[#allocation0]]
  $region41: #{tpu_custom_call.1} parent=0
    _
  %s4 = ssub.s32 1, %s2
  %s5 = scalar_select 0, %s4, %s2
  $region1: #{tpu_custom_call.1} parent=0
    #allocation2 [shape = 'u8[1024]{0}', space=vmem, size = 0x400, scoped, tag = 'input window, operand 0']
    #allocation3 [shape = 's32[2]{0}', space=sflag, size = 0x8, scoped, tag = 'scoped memory for tpu_custom_call.1']
    #allocation4 [shape = 's32[2]{0}', space=sflag, size = 0x8, scoped, tag = 'scoped memory for tpu_custom_call.1']
    #allocation5 [shape = 'u8[1024]{0}', space=vmem, size = 0x400, scoped, tag = 'output window, operand 0']
    %6 = vsyncpa [#allocation3], 0
    %s7 = scalar_lea.sflag [#allocation3], 1
    %8 = vsyncpa %s7, 0
    %9 = vsyncpa [#allocation4], 0
    %s10 = scalar_lea.sflag [#allocation4], 1
    %11 = vsyncpa %s10, 0
    loop: start=0, step=1, limit=6
    $region2: #{tpu_custom_call.1} parent=1 // loop_pre_header
      _
    $region3: #{tpu_custom_call.1} parent=1 // loop_header
      %s13 = sphi 0, %s17
      %p14 = scmp.ge.s32.totalorder %s13, 6
      %s23 = sphi 0, %s25
      %s26 = sphi 0, %s23
      %s27 = sphi 0, %s26
      %s43 = sphi 0, %s27
      %s49 = sphi 0, %s51
      %s52 = sphi 0, %s49
      %s53 = sphi 0, %s52
      %s69 = sphi 0, %s53
    $region4: #{tpu_custom_call.1} parent=1 // loop_header_branch
      %16 = sbr.rel (%p14) target = $region8
    $region5: #{tpu_custom_call.1} parent=1 // loop_body
      %s18 = ssub.s32 %s13, 1
      %s19 = ssub.s32 %s13, 2
      %s20 = sadd.s32 %s13, 1
      %s21 = ssub.s32 %s13, %s20
      %p22 = scmp.eq.s32.totalorder %s21, 0
      %s24 = sadd.s32 %s23, 1
      %s25 = scalar_select %p22, %s23, %s24
      %p28 = pneg %p22
      %p29 = scmp.eq.s32.totalorder %s13, 3
      %p30 = por %p28, %p29
      %p31 = scmp.ne.s32.totalorder %s23, %s26
      %p32 = scmp.eq.s32.totalorder %s13, 0
      %p33 = por %p31, %p32
      %p34 = scmp.ne.s32.totalorder %s23, %s26
      %p35 = scmp.eq.s32.totalorder %s18, 3
      %p36 = por %p34, %p35
      %p37 = scmp.ne.s32.totalorder %s26, %s27
      %p38 = scmp.eq.s32.totalorder %s18, 0
      %p39 = por %p37, %p38
      %p40 = scmp.ne.s32.totalorder %s26, %s27
      %p41 = scmp.eq.s32.totalorder %s19, 3
      %p42 = por %p40, %p41
      %p44 = scmp.ne.s32.totalorder %s27, %s43
      %p45 = scmp.eq.s32.totalorder %s19, 0
      %p46 = por %p44, %p45
      %s47 = ssub.s32 %s13, %s20
      %p48 = scmp.eq.s32.totalorder %s47, 0
      %s50 = sadd.s32 %s49, 1
      %s51 = scalar_select %p48, %s49, %s50
      %p54 = pneg %p48
      %p55 = scmp.eq.s32.totalorder %s13, 3
      %p56 = por %p54, %p55
      %p57 = scmp.ne.s32.totalorder %s49, %s52
      %p58 = scmp.eq.s32.totalorder %s13, 0
      %p59 = por %p57, %p58
      %p60 = scmp.ne.s32.totalorder %s49, %s52
      %p61 = scmp.eq.s32.totalorder %s18, 3
      %p62 = por %p60, %p61
      %p63 = scmp.ne.s32.totalorder %s52, %s53
      %p64 = scmp.eq.s32.totalorder %s18, 0
      %p65 = por %p63, %p64
      %p66 = scmp.ne.s32.totalorder %s52, %s53
      %p67 = scmp.eq.s32.totalorder %s19, 3
      %p68 = por %p66, %p67
      %p70 = scmp.ne.s32.totalorder %s53, %s69
      %p71 = scmp.eq.s32.totalorder %s19, 0
      %p72 = por %p70, %p71
      %p73 = scmp.le.s32.totalorder 1, %s13
      %p74 = scmp.lt.s32.totalorder %s13, 5
      %p75 = pnand %p73, %p74
      %p76 = pneg %p75
      // Predicated region
      $region9: #{tpu_custom_call.1} parent=5 // pred_check
        _
      $region10: #{tpu_custom_call.1} parent=5 // pred_check_branch
        %78 = sbr.rel (%p75) target = $region12
      $region11: #{tpu_custom_call.1} parent=5 // pred_region
        %s79 = ssub.s32 %s13, 1
      $region12: #{tpu_custom_call.1} parent=5 // pred_fallthru
        _
      %p80 = scmp.lt.s32.totalorder %s13, 4
      // Predicated region
      $region13: #{tpu_custom_call.1} parent=5 // pred_check
        %p81 = pneg %p80
      $region14: #{tpu_custom_call.1} parent=5 // pred_check_branch
        %83 = sbr.rel (%p81) target = $region16
      $region15: #{tpu_custom_call.1} parent=5 // pred_region
        // Predicated region
        $region17: #{tpu_custom_call.1} parent=15 // pred_check
          %p84 = pneg %p33
        $region18: #{tpu_custom_call.1} parent=15 // pred_check_branch
          %86 = sbr.rel (%p84) target = $region20
        $region19: #{tpu_custom_call.1} parent=15 // pred_region
          %s87 = sand.u32 %s23, 1
          %s88 = scalar_lea.sflag [#allocation3], %s87
          %s89 = sand.u32 %s23, 1
          %s90 = scalar_lea.vmem [#allocation2], %s89
          %s92 = ssub.s32 16, 16
          %93 = vsyncadd %s88, %s92
          %s94 = smul.addr %s13, 16
          %s95 = scalar_lea.hbm %s0, %s94
          %s97 = sshll.u32 %s90, 4
          %s98 = int_to_ptr.vmem [resolvable:$true] %s97
          %100 = dma.hbm_to_vmem [thread:$0]  %s95, 16, %s98, %s88
        $region20: #{tpu_custom_call.1} parent=15 // pred_fallthru
          _
      $region16: #{tpu_custom_call.1} parent=5 // pred_fallthru
        _
      %p101 = scmp.le.s32.totalorder 1, %s13
      %p102 = scmp.lt.s32.totalorder %s13, 5
      %p103 = pnand %p101, %p102
      %p104 = pneg %p103
      // Predicated region
      $region21: #{tpu_custom_call.1} parent=5 // pred_check
        _
      $region22: #{tpu_custom_call.1} parent=5 // pred_check_branch
        %106 = sbr.rel (%p103) target = $region24
      $region23: #{tpu_custom_call.1} parent=5 // pred_region
        %s107 = ssub.s32 %s13, 1
        %s108 = sand.u32 %s26, 1
        %s109 = scalar_lea.sflag [#allocation3], %s108
        %s110 = sand.u32 %s26, 1
        %s111 = scalar_lea.vmem [#allocation2], %s110
        // Predicated region
        $region25: #{tpu_custom_call.1} parent=23 // pred_check
          %p112 = pneg %p39
        $region26: #{tpu_custom_call.1} parent=23 // pred_check_branch
          %114 = sbr.rel (%p112) target = $region28
        $region27: #{tpu_custom_call.1} parent=23 // pred_region
          %115 = dma.done %s109, 16
        $region28: #{tpu_custom_call.1} parent=23 // pred_fallthru
          _
        %s116 = sand.u32 %s26, 1
        %s117 = scalar_lea.sflag [#allocation3], %s116
        %s118 = sand.u32 %s26, 1
        %s119 = scalar_lea.vmem [#allocation2], %s118
        %p120 = pneg %p39
        %p121 = pneg %p36
        %p122 = pneg %p65
        %p123 = pneg %p62
        %s124 = sand.u32 %s52, 1
        %s125 = scalar_lea.sflag [#allocation4], %s124
        %s126 = sand.u32 %s52, 1
        %s127 = scalar_lea.vmem [#allocation5], %s126
        %v128 = vld [vmem:[%s111] sm:$0x1]
        %v129 = vrcp.pop 0.6666667
        %v130 = vmul.f32 %v128, %v129
        %v131 = vmul.f32 %v130, 0.8
        %v132 = vxor.u32 %v131, 2147483648
        %v133 = vmul.f32 %v132, 1.442695
        %v134 = vpow.pop %v133
        %v135 = vadd.f32 %v134, 1.0
        %v136 = vrcp.pop %v135
        %v137 = vmul.f32 1.0, %v136
        %138 = vxpose.xlu0.b32.start [1/16] %v128, 128
        %139 = vxpose.xlu0.b32.cont [2/16] 0.0, 128
        %140 = vxpose.xlu0.b32.cont [3/16] 0.0, 128
        %141 = vxpose.xlu0.b32.cont [4/16] 0.0, 128
        %142 = vxpose.xlu0.b32.cont [5/16] 0.0, 128
        %143 = vxpose.xlu0.b32.cont [6/16] 0.0, 128
        %144 = vxpose.xlu0.b32.cont [7/16] 0.0, 128
        %145 = vxpose.xlu0.b32.cont [8/16] 0.0, 128
        %146 = vxpose.xlu0.b32.cont [9/16] 0.0, 128
        %147 = vxpose.xlu0.b32.cont [10/16] 0.0, 128
        %148 = vxpose.xlu0.b32.cont [11/16] 0.0, 128
        %149 = vxpose.xlu0.b32.cont [12/16] 0.0, 128
        %150 = vxpose.xlu0.b32.cont [13/16] 0.0, 128
        %151 = vxpose.xlu0.b32.cont [14/16] 0.0, 128
        %152 = vxpose.xlu0.b32.cont [15/16] 0.0, 128
        %153 = vxpose.xlu0.b32.end [16/16] 0.0, 128
        %v154 = vpop.trf.xlu0
        %v155 = vpop.trf.xlu0
        %v156 = vpop.trf.xlu0
        %v157 = vpop.trf.xlu0
        %v158 = vpop.trf.xlu0
        %v159 = vpop.trf.xlu0
        %v160 = vpop.trf.xlu0
        %v161 = vpop.trf.xlu0
        %v162 = vpop.trf.xlu0
        %v163 = vpop.trf.xlu0
        %v164 = vpop.trf.xlu0
        %v165 = vpop.trf.xlu0
        %v166 = vpop.trf.xlu0
        %v167 = vpop.trf.xlu0
        %v168 = vpop.trf.xlu0
        %v169 = vpop.trf.xlu0
        %v170 = vlaneseq
        %v171 = vshrl.u32 %v170, 7
        %v172 = vadd.s32 %v171, 8
        %v173 = vadd.s32 %v171, 16
        %v174 = vadd.s32 %v171, 24
        %v175 = vadd.s32 %v171, 32
        %v176 = vadd.s32 %v171, 40
        %v177 = vadd.s32 %v171, 48
        %v178 = vadd.s32 %v171, 56
        %v179 = vadd.s32 %v171, 64
        %v180 = vadd.s32 %v171, 72
        %v181 = vadd.s32 %v171, 80
        %v182 = vadd.s32 %v171, 88
        %v183 = vadd.s32 %v171, 96
        %v184 = vadd.s32 %v171, 104
        %v185 = vadd.s32 %v171, 112
        %v186 = vadd.s32 %v171, 120
        %v187 = vlaneseq
        %v188 = vand.u32 %v187, 127
        %190 = vset.pattern.permute.xlu0 0
        %191 = vperm.xlu0 %190, %v154
        %v192 = vpop.permute.xlu0 %191
        %195 = vset.pattern.permute.xlu0 0
        %196 = vperm.xlu0 %195, %v155
        %v197 = vpop.permute.xlu0 %196
        %200 = vset.pattern.permute.xlu0 0
        %201 = vperm.xlu0 %200, %v156
        %v202 = vpop.permute.xlu0 %201
        %205 = vset.pattern.permute.xlu0 0
        %206 = vperm.xlu0 %205, %v157
        %v207 = vpop.permute.xlu0 %206
        %210 = vset.pattern.permute.xlu0 0
        %211 = vperm.xlu0 %210, %v158
        %v212 = vpop.permute.xlu0 %211
        %215 = vset.pattern.permute.xlu0 0
        %216 = vperm.xlu0 %215, %v159
        %v217 = vpop.permute.xlu0 %216
        %220 = vset.pattern.permute.xlu0 0
        %221 = vperm.xlu0 %220, %v160
        %v222 = vpop.permute.xlu0 %221
        %225 = vset.pattern.permute.xlu0 0
        %226 = vperm.xlu0 %225, %v161
        %v227 = vpop.permute.xlu0 %226
        %230 = vset.pattern.permute.xlu0 0
        %231 = vperm.xlu0 %230, %v162
        %v232 = vpop.permute.xlu0 %231
        %235 = vset.pattern.permute.xlu0 0
        %236 = vperm.xlu0 %235, %v163
        %v237 = vpop.permute.xlu0 %236
        %240 = vset.pattern.permute.xlu0 0
        %241 = vperm.xlu0 %240, %v164
        %v242 = vpop.permute.xlu0 %241
        %245 = vset.pattern.permute.xlu0 0
        %246 = vperm.xlu0 %245, %v165
        %v247 = vpop.permute.xlu0 %246
        %250 = vset.pattern.permute.xlu0 0
        %251 = vperm.xlu0 %250, %v166
        %v252 = vpop.permute.xlu0 %251
        %255 = vset.pattern.permute.xlu0 0
        %256 = vperm.xlu0 %255, %v167
        %v257 = vpop.permute.xlu0 %256
        %260 = vset.pattern.permute.xlu0 0
        %261 = vperm.xlu0 %260, %v168
        %v262 = vpop.permute.xlu0 %261
        %265 = vset.pattern.permute.xlu0 0
        %266 = vperm.xlu0 %265, %v169
        %v267 = vpop.permute.xlu0 %266
        %v270 = vlaneseq
        %v271 = vshrl.u32 %v270, 7
        %v272 = vsub.s32 0, %v271
        %v273 = vrot.slane %v128, %v272
        %vm275 = vcmp.lt.f32.partialorder %v192, %v273
        %vm276 = vcmp.lt.f32.partialorder %v197, %v273
        %vm277 = vcmp.lt.f32.partialorder %v202, %v273
        %vm278 = vcmp.lt.f32.partialorder %v207, %v273
        %vm279 = vcmp.lt.f32.partialorder %v212, %v273
        %vm280 = vcmp.lt.f32.partialorder %v217, %v273
        %vm281 = vcmp.lt.f32.partialorder %v222, %v273
        %vm282 = vcmp.lt.f32.partialorder %v227, %v273
        %vm283 = vcmp.lt.f32.partialorder %v232, %v273
        %vm284 = vcmp.lt.f32.partialorder %v237, %v273
        %vm285 = vcmp.lt.f32.partialorder %v242, %v273
        %vm286 = vcmp.lt.f32.partialorder %v247, %v273
        %vm287 = vcmp.lt.f32.partialorder %v252, %v273
        %vm288 = vcmp.lt.f32.partialorder %v257, %v273
        %vm289 = vcmp.lt.f32.partialorder %v262, %v273
        %vm290 = vcmp.lt.f32.partialorder %v267, %v273
        %vm291 = vcmp.eq.f32.partialorder %v192, %v273
        %vm292 = vcmp.eq.f32.partialorder %v197, %v273
        %vm293 = vcmp.eq.f32.partialorder %v202, %v273
        %vm294 = vcmp.eq.f32.partialorder %v207, %v273
        %vm295 = vcmp.eq.f32.partialorder %v212, %v273
        %vm296 = vcmp.eq.f32.partialorder %v217, %v273
        %vm297 = vcmp.eq.f32.partialorder %v222, %v273
        %vm298 = vcmp.eq.f32.partialorder %v227, %v273
        %vm299 = vcmp.eq.f32.partialorder %v232, %v273
        %vm300 = vcmp.eq.f32.partialorder %v237, %v273
        %vm301 = vcmp.eq.f32.partialorder %v242, %v273
        %vm302 = vcmp.eq.f32.partialorder %v247, %v273
        %vm303 = vcmp.eq.f32.partialorder %v252, %v273
        %vm304 = vcmp.eq.f32.partialorder %v257, %v273
        %vm305 = vcmp.eq.f32.partialorder %v262, %v273
        %vm306 = vcmp.eq.f32.partialorder %v267, %v273
        %vm307 = vcmp.lt.s32.totalorder %v171, %v188
        %vm308 = vcmp.lt.s32.totalorder %v172, %v188
        %vm309 = vcmp.lt.s32.totalorder %v173, %v188
        %vm310 = vcmp.lt.s32.totalorder %v174, %v188
        %vm311 = vcmp.lt.s32.totalorder %v175, %v188
        %vm312 = vcmp.lt.s32.totalorder %v176, %v188
        %vm313 = vcmp.lt.s32.totalorder %v177, %v188
        %vm314 = vcmp.lt.s32.totalorder %v178, %v188
        %vm315 = vcmp.lt.s32.totalorder %v179, %v188
        %vm316 = vcmp.lt.s32.totalorder %v180, %v188
        %vm317 = vcmp.lt.s32.totalorder %v181, %v188
        %vm318 = vcmp.lt.s32.totalorder %v182, %v188
        %vm319 = vcmp.lt.s32.totalorder %v183, %v188
        %vm320 = vcmp.lt.s32.totalorder %v184, %v188
        %vm321 = vcmp.lt.s32.totalorder %v185, %v188
        %vm322 = vcmp.lt.s32.totalorder %v186, %v188
        %vm323 = vmand %vm291, %vm307
        %vm324 = vmand %vm292, %vm308
        %vm325 = vmand %vm293, %vm309
        %vm326 = vmand %vm294, %vm310
        %vm327 = vmand %vm295, %vm311
        %vm328 = vmand %vm296, %vm312
        %vm329 = vmand %vm297, %vm313
        %vm330 = vmand %vm298, %vm314
        %vm331 = vmand %vm299, %vm315
        %vm332 = vmand %vm300, %vm316
        %vm333 = vmand %vm301, %vm317
        %vm334 = vmand %vm302, %vm318
        %vm335 = vmand %vm303, %vm319
        %vm336 = vmand %vm304, %vm320
        %vm337 = vmand %vm305, %vm321
        %vm338 = vmand %vm306, %vm322
        %vm339 = vmor %vm275, %vm323
        %vm340 = vmor %vm276, %vm324
        %vm341 = vmor %vm277, %vm325
        %vm342 = vmor %vm278, %vm326
        %vm343 = vmor %vm279, %vm327
        %vm344 = vmor %vm280, %vm328
        %vm345 = vmor %vm281, %vm329
        %vm346 = vmor %vm282, %vm330
        %vm347 = vmor %vm283, %vm331
        %vm348 = vmor %vm284, %vm332
        %vm349 = vmor %vm285, %vm333
        %vm350 = vmor %vm286, %vm334
        %vm351 = vmor %vm287, %vm335
        %vm352 = vmor %vm288, %vm336
        %vm353 = vmor %vm289, %vm337
        %vm354 = vmor %vm290, %vm338
        %v355 = vsel %vm339, 1, 0
        %v356 = vsel %vm340, 1, 0
        %v357 = vsel %vm341, 1, 0
        %v358 = vsel %vm342, 1, 0
        %v359 = vsel %vm343, 1, 0
        %v360 = vsel %vm344, 1, 0
        %v361 = vsel %vm345, 1, 0
        %v362 = vsel %vm346, 1, 0
        %v363 = vsel %vm347, 1, 0
        %v364 = vsel %vm348, 1, 0
        %v365 = vsel %vm349, 1, 0
        %v366 = vsel %vm350, 1, 0
        %v367 = vsel %vm351, 1, 0
        %v368 = vsel %vm352, 1, 0
        %v369 = vsel %vm353, 1, 0
        %v370 = vsel %vm354, 1, 0
        %v371 = vcvt.s32.f32 %v355
        %v372 = vcvt.s32.f32 %v356
        %v373 = vcvt.s32.f32 %v357
        %v374 = vcvt.s32.f32 %v358
        %v375 = vcvt.s32.f32 %v359
        %v376 = vcvt.s32.f32 %v360
        %v377 = vcvt.s32.f32 %v361
        %v378 = vcvt.s32.f32 %v362
        %v379 = vcvt.s32.f32 %v363
        %v380 = vcvt.s32.f32 %v364
        %v381 = vcvt.s32.f32 %v365
        %v382 = vcvt.s32.f32 %v366
        %v383 = vcvt.s32.f32 %v367
        %v384 = vcvt.s32.f32 %v368
        %v385 = vcvt.s32.f32 %v369
        %v386 = vcvt.s32.f32 %v370
        %387 = vmatprep.subr.mxu0 0.0
        %388 = vmatpush1.msra.mxu0 %v371
        %389 = vmatprep.subr.mxu0 0.0
        %390 = vmatpush1.msra.mxu0 %v372
        %391 = vmatprep.subr.mxu0 0.0
        %392 = vmatpush1.msra.mxu0 %v373
        %393 = vmatprep.subr.mxu0 0.0
        %394 = vmatpush1.msra.mxu0 %v374
        %395 = vmatprep.subr.mxu0 0.0
        %396 = vmatpush1.msra.mxu0 %v375
        %397 = vmatprep.subr.mxu0 0.0
        %398 = vmatpush1.msra.mxu0 %v376
        %399 = vmatprep.subr.mxu0 0.0
        %400 = vmatpush1.msra.mxu0 %v377
        %401 = vmatprep.subr.mxu0 0.0
        %402 = vmatpush1.msra.mxu0 %v378
        %403 = vmatprep.subr.mxu0 0.0
        %404 = vmatpush1.msra.mxu0 %v379
        %405 = vmatprep.subr.mxu0 0.0
        %406 = vmatpush1.msra.mxu0 %v380
        %407 = vmatprep.subr.mxu0 0.0
        %408 = vmatpush1.msra.mxu0 %v381
        %409 = vmatprep.subr.mxu0 0.0
        %410 = vmatpush1.msra.mxu0 %v382
        %411 = vmatprep.subr.mxu0 0.0
        %412 = vmatpush1.msra.mxu0 %v383
        %413 = vmatprep.subr.mxu0 0.0
        %414 = vmatpush1.msra.mxu0 %v384
        %415 = vmatprep.subr.mxu0 0.0
        %416 = vmatpush1.msra.mxu0 %v385
        %417 = vmatprep.subr.mxu0 0.0
        %418 = vmatpush1.msra.mxu0 %v386
        %419 = vmatprep.subr.mxu0 0.0
        %420 = vmatpush1.msra.mxu0 0.0
        %421 = vmatprep.subr.mxu0 0.0
        %422 = vmatpush1.msra.mxu0 0.0
        %423 = vmatprep.subr.mxu0 0.0
        %424 = vmatpush1.msra.mxu0 0.0
        %425 = vmatprep.subr.mxu0 0.0
        %426 = vmatpush1.msra.mxu0 0.0
        %427 = vmatprep.subr.mxu0 0.0
        %428 = vmatpush1.msra.mxu0 0.0
        %429 = vmatprep.subr.mxu0 0.0
        %430 = vmatpush1.msra.mxu0 0.0
        %431 = vmatprep.subr.mxu0 0.0
        %432 = vmatpush1.msra.mxu0 0.0
        %433 = vmatprep.subr.mxu0 0.0
        %434 = vmatpush1.msra.mxu0 0.0
        %435 = vmatprep.subr.mxu0 0.0
        %436 = vmatpush1.msra.mxu0 0.0
        %437 = vmatprep.subr.mxu0 0.0
        %438 = vmatpush1.msra.mxu0 0.0
        %439 = vmatprep.subr.mxu0 0.0
        %440 = vmatpush1.msra.mxu0 0.0
        %441 = vmatprep.subr.mxu0 0.0
        %442 = vmatpush1.msra.mxu0 0.0
        %443 = vmatprep.subr.mxu0 0.0
        %444 = vmatpush1.msra.mxu0 0.0
        %445 = vmatprep.subr.mxu0 0.0
        %446 = vmatpush1.msra.mxu0 0.0
        %447 = vmatprep.subr.mxu0 0.0
        %448 = vmatpush1.msra.mxu0 0.0
        %449 = vmatprep.subr.mxu0 0.0
        %450 = vmatpush1.msra.mxu0 0.0
        %451 = vmatprep.mubr.f32.mxu0 0.0
        %452 = vmatmul.mubr.f32.gmra.mrb[0].mxu0 1.0
        %v453 = vpop.f32.mrb[0].mxu0
        %v454 = vadd.f32 0.0, %v453
        %v455 = vpop.f32.mrb[0].mxu0
        %456 = vdwg.mxu0
        %vm457 = vcmp.lt.f32.partialorder %v454, 32.0
        %v458 = vsel %vm457, 0.0, %v137
        %459 = vst [vmem:[%s127] sm:$0x1] %v458
        %s460 = sand.u32 %s52, 1
        %s461 = scalar_lea.sflag [#allocation4], %s460
        %s462 = sand.u32 %s52, 1
        %s463 = scalar_lea.vmem [#allocation5], %s462
        // Predicated region
        $region29: #{tpu_custom_call.1} parent=23 // pred_check
          %p464 = pneg %p62
        $region30: #{tpu_custom_call.1} parent=23 // pred_check_branch
          %466 = sbr.rel (%p464) target = $region32
        $region31: #{tpu_custom_call.1} parent=23 // pred_region
          %s468 = ssub.s32 16, 16
          %469 = vsyncadd %s461, %s468
          %s470 = smul.addr %s18, 16
          %s471 = scalar_lea.hbm %s1, %s470
          %s473 = sshll.u32 %s463, 4
          %s474 = int_to_ptr.vmem [resolvable:$true] %s473
          %476 = dma.vmem_to_hbm [thread:$0]  %s474, 16, %s471, %s461
        $region32: #{tpu_custom_call.1} parent=23 // pred_fallthru
          _
      $region24: #{tpu_custom_call.1} parent=5 // pred_fallthru
        _
      %p477 = scmp.le.s32.totalorder 2, %s13
      // Predicated region
      $region33: #{tpu_custom_call.1} parent=5 // pred_check
        %p478 = pneg %p477
      $region34: #{tpu_custom_call.1} parent=5 // pred_check_branch
        %480 = sbr.rel (%p478) target = $region36
      $region35: #{tpu_custom_call.1} parent=5 // pred_region
        %s481 = ssub.s32 %s13, 2
        // Predicated region
        $region37: #{tpu_custom_call.1} parent=35 // pred_check
          %p482 = pneg %p68
        $region38: #{tpu_custom_call.1} parent=35 // pred_check_branch
          %484 = sbr.rel (%p482) target = $region40
        $region39: #{tpu_custom_call.1} parent=35 // pred_region
          %s485 = sand.u32 %s53, 1
          %s486 = scalar_lea.sflag [#allocation4], %s485
          %s487 = sand.u32 %s53, 1
          %s488 = scalar_lea.vmem [#allocation5], %s487
          %489 = dma.done %s486, 16
        $region40: #{tpu_custom_call.1} parent=35 // pred_fallthru
          _
      $region36: #{tpu_custom_call.1} parent=5 // pred_fallthru
        _
    $region6: #{tpu_custom_call.1} parent=1 // loop_footer
      %s17 = sadd.s32 1, %s13
    $region7: #{tpu_custom_call.1} parent=1 // loop_footer_branch
      %12 = sbr.rel target = $region3
    $region8: #{tpu_custom_call.1} parent=1 // loop_exit
      _
    %490 = vsyncpa [#allocation3], 1
    %s491 = scalar_lea.sflag [#allocation3], 1
    %492 = vsyncpa %s491, 1
    %493 = vsyncpa [#allocation4], 1
    %s494 = scalar_lea.sflag [#allocation4], 1
    %495 = vsyncpa %s494, 1

</llo_original>
